<compile_context>
chip_gen: v6e
topology: v6e:2x2x1
jax: 0.10.0
libtpu: 0.0.40
codegen_flags: <defaults>
</compile_context>

<pallas_src>
import functools
import math

import jax
import jax.numpy as jnp
from jax.experimental import pallas as pl
from jax.experimental.pallas import tpu as pltpu


_LANES = 128                      # lane width of the streamed slab
_NSPLIT = 2                       # leading split axis (per-split partial outputs)
_TILE_ROWS = 4096                 # rows per block: 4096*128*4B = 2 MiB f32 / 1 MiB bf16


def _cdiv(a, b):
    return -(-a // b)


def _round_up(a, b):
    return _cdiv(a, b) * b


def _ens_loss_kernel(x1_ref, x2_ref, o_ref, acc_ref, *,
                     logit_thr, rows, tile_rows, steps_per_split):
    i = pl.program_id(0)
    j = pl.program_id(1)

    @pl.when(j == 0)
    def _():
        acc_ref[...] = jnp.zeros_like(acc_ref)

    x1 = x1_ref[...].astype(jnp.float32)
    x2 = x2_ref[...].astype(jnp.float32)

    # Confidence_Mask in logit space (thr > 0.5 => the two branches are disjoint):
    #   p > thr      <=>  x >  logit(thr)
    #   p < 1 - thr  <=>  x < -logit(thr)
    hi = jnp.logical_and(x1 > logit_thr, x2 > logit_thr)
    lo = jnp.logical_and(x1 < -logit_thr, x2 < -logit_thr)
    conf = jnp.logical_or(hi, lo)

    # Rows of this block that actually exist: guards the padded tail of a partial
    # last block and fully-duplicated (clamped) grid steps.
    block_idx = i * steps_per_split + j              # un-clamped global block index
    row0 = block_idx * tile_rows
    local_row = jax.lax.broadcasted_iota(jnp.int32, x1.shape, 0)
    valid = (row0 + local_row) < rows

    # BCE(sigmoid(x1), (x1>0).float()) == softplus(-|x1|) = log(1 + exp(-|x1|)).
    per_elem = jnp.log(1.0 + jnp.exp(-jnp.abs(x1)))
    loss = jnp.where(jnp.logical_and(conf, valid), per_elem, 0.0)

    # vreg-aligned partial sums: reduce only across whole-vreg groups (pure VPU adds);
    # the (tile_rows//8, 8, 128) view is layout-preserving (splits the major dim).
    acc_ref[...] += jnp.sum(loss.reshape(-1, 8, loss.shape[1]), axis=0)

    @pl.when(j == pl.num_programs(1) - 1)
    def _():
        o_ref[0] = acc_ref[...]                      # raw per-split partial sums


def ens_loss(inp1, inp2, thr=0.85, *, core_parallel=False):
    """Pallas TPU implementation of Ens_loss.forward(inp1, inp2) -> scalar BCE loss."""
    assert inp1.shape == inp2.shape, (inp1.shape, inp2.shape)
    # thr <= 0.5 would make the two mask indicators overlap (mask == 2), which PyTorch
    # BCE rejects anyway (inputs outside [0, 1]); guard it explicitly.
    assert thr > 0.5, "Ens_loss requires thr > 0.5"
    n_elems = math.prod(inp1.shape)
    assert n_elems > 0

    x1 = inp1.reshape(-1)
    x2 = inp2.reshape(-1)

    # Lane-dense slab with NO copy in the common case (n % 128 == 0 and >= 1024 elems).
    padded = max(_round_up(n_elems, _LANES), 8 * _LANES)
    if padded != n_elems:
        # TODO(synk): lane-level in-kernel tail masking would remove this copy too;
        # only hit for n % 128 != 0 or tiny inputs.  Zero logits fall outside the
        # confidence mask (thr > 0.5), so they contribute exactly 0 loss.
        x1 = jnp.pad(x1, (0, padded - n_elems))
        x2 = jnp.pad(x2, (0, padded - n_elems))
    rows = padded // _LANES
    x1 = x1.reshape(rows, _LANES)
    x2 = x2.reshape(rows, _LANES)

    nsplit = _NSPLIT if rows >= _NSPLIT * 8 else 1
    tile_rows = min(_TILE_ROWS, _round_up(_cdiv(rows, nsplit), 8))

    total_blocks = _cdiv(rows, tile_rows)
    steps_per_split = _cdiv(total_blocks, nsplit)

    def block_index(i, j):
        # Clamp so over-provisioned (i, j) steps never DMA out of bounds; their
        # contribution is zeroed in-kernel by the row-validity mask (un-clamped idx).
        return (jnp.minimum(i * steps_per_split + j, total_blocks - 1), 0)

    in_spec = pl.BlockSpec((tile_rows, _LANES), block_index)

    kernel = functools.partial(
        _ens_loss_kernel,
        logit_thr=float(math.log(thr / (1.0 - thr))),
        rows=rows,
        tile_rows=tile_rows,
        steps_per_split=steps_per_split)

    if core_parallel:
        dim_sem = (pltpu.CORE_PARALLEL, pltpu.ARBITRARY)   # v7x: land splits on both TCs
    else:
        dim_sem = ("parallel", "arbitrary")

    partials = pl.pallas_call(
        kernel,
        out_shape=jax.ShapeDtypeStruct((nsplit, 8, _LANES), jnp.float32),
        grid_spec=pltpu.PrefetchScalarGridSpec(
            num_scalar_prefetch=0,
            grid=(nsplit, steps_per_split),
            in_specs=[in_spec, in_spec],
            out_specs=pl.BlockSpec((1, 8, _LANES), lambda i, j: (i, 0, 0)),
            scratch_shapes=[pltpu.VMEM((8, _LANES), jnp.float32)],
        ),
        compiler_params=pltpu.CompilerParams(
            dimension_semantics=dim_sem,
            vmem_limit_bytes=48 * 1024 * 1024,
        ),
    )(x1, x2)

    # Tiny final reduce over (nsplit, 8, 128) partials, then the mean's 1/n.
    return jnp.sum(partials) / jnp.float32(n_elems)


def _reference(inp1, inp2, thr=0.85):
    """Faithful (clamped-log) JAX port of the PyTorch forward, for verification."""
    p1 = jax.nn.sigmoid(inp1.astype(jnp.float32))
    p2 = jax.nn.sigmoid(inp2.astype(jnp.float32))
    mask = ((p1 > thr) & (p2 > thr)).astype(jnp.float32) \
         + ((p1 < 1.0 - thr) & (p2 < 1.0 - thr)).astype(jnp.float32)
    tar = (p1 > 0.5).astype(jnp.float32)
    pm = p1 * mask
    tm = tar * mask
    log_p = jnp.maximum(jnp.log(pm), -100.0)
    log_1mp = jnp.maximum(jnp.log(1.0 - pm), -100.0)
    return jnp.mean(-(tm * log_p + (1.0 - tm) * log_1mp))


if __name__ == "__main__":
    key = jax.random.PRNGKey(0)
    k1, k2 = jax.random.split(key)

    N, C, H, W = 2, 4, 16, 16  # NCHW logits
    inp1 = jax.random.normal(k1, (N, C, H, W), jnp.float32) * 3.0
    inp2 = jax.random.normal(k2, (N, C, H, W), jnp.float32) * 3.0

    out = ens_loss(inp1, inp2)
    out = jax.block_until_ready(out)

    ref = _reference(inp1, inp2)
    assert bool(jnp.isfinite(out)), out
    assert jnp.allclose(out, ref, rtol=1e-5, atol=1e-5), (out, ref)

    print("KERNEL_OK")
</pallas_src>

<mosaic_0001>
module attributes {stable_mosaic.version = 11 : i64} {
  func.func @_ens_loss_kernel(%arg0: i32, %arg1: i32, %arg2: memref<8x128xf32, #tpu.memory_space<vmem>>, %arg3: memref<8x128xf32, #tpu.memory_space<vmem>>, %arg4: memref<1x8x128xf32, #tpu.memory_space<vmem>>, %arg5: memref<8x128xf32, #tpu.memory_space<vmem>>) attributes {dimension_semantics = [#tpu.dimension_semantics<parallel>, #tpu.dimension_semantics<arbitrary>], iteration_bounds = array<i64: 2, 1>, scalar_prefetch = 0 : i64, scratch_operands = 1 : i64, tpu.core_type = #tpu.core_type<tc>, window_params = [{transform_indices = @transform_0, window_bounds = array<i64: 8, 128>}, {transform_indices = @transform_1, window_bounds = array<i64: 8, 128>}, {transform_indices = @transform_2, window_bounds = array<i64: 1, 8, 128>}]} {
    %c0_i32 = arith.constant 0 : i32
    %0 = arith.cmpi eq, %arg1, %c0_i32 : i32
    %1 = arith.extui %0 : i1 to i32
    %c0_i32_0 = arith.constant 0 : i32
    %2 = arith.cmpi ne, %1, %c0_i32_0 : i32
    scf.if %2 {
      %cst_17 = arith.constant 0.000000e+00 : f32
      %42 = vector.broadcast %cst_17 : f32 to vector<8x128xf32>
      %c0_18 = arith.constant 0 : index
      %c0_19 = arith.constant 0 : index
      %43 = vector.load %arg5[%c0_18, %c0_19] : memref<8x128xf32, #tpu.memory_space<vmem>>, vector<8x128xf32>
      tpu.vector_store %arg5[%c0_18, %c0_19], %42 {strides = array<i32>} : memref<8x128xf32, #tpu.memory_space<vmem>>, vector<8x128xf32>,
    } else {
    }
    %c0 = arith.constant 0 : index
    %c0_1 = arith.constant 0 : index
    %3 = vector.load %arg2[%c0, %c0_1] : memref<8x128xf32, #tpu.memory_space<vmem>>, vector<8x128xf32>
    %c0_2 = arith.constant 0 : index
    %c0_3 = arith.constant 0 : index
    %4 = vector.load %arg3[%c0_2, %c0_3] : memref<8x128xf32, #tpu.memory_space<vmem>>, vector<8x128xf32>
    %cst = arith.constant 1.73460102 : f32
    %5 = vector.broadcast %cst : f32 to vector<8x128xf32>
    %6 = arith.cmpf ogt, %3, %5 : vector<8x128xf32>
    %cst_4 = arith.constant 1.73460102 : f32
    %7 = vector.broadcast %cst_4 : f32 to vector<8x128xf32>
    %8 = arith.cmpf ogt, %4, %7 : vector<8x128xf32>
    %9 = arith.andi %6, %8 : vector<8x128xi1>
    %cst_5 = arith.constant -1.73460102 : f32
    %10 = vector.broadcast %cst_5 : f32 to vector<8x128xf32>
    %11 = arith.cmpf olt, %3, %10 : vector<8x128xf32>
    %cst_6 = arith.constant -1.73460102 : f32
    %12 = vector.broadcast %cst_6 : f32 to vector<8x128xf32>
    %13 = arith.cmpf olt, %4, %12 : vector<8x128xf32>
    %14 = arith.andi %11, %13 : vector<8x128xi1>
    %15 = arith.ori %9, %14 : vector<8x128xi1>
    %c1_i32 = arith.constant 1 : i32
    %16 = arith.muli %arg0, %c1_i32 : i32
    %17 = arith.addi %16, %arg1 : i32
    %c8_i32 = arith.constant 8 : i32
    %18 = arith.muli %17, %c8_i32 : i32
    %19 = tpu.iota {dimensions = array<i32: 0>} : vector<8x128xi32>
    %20 = vector.broadcast %18 : i32 to vector<8x128xi32>
    %21 = arith.addi %20, %19 : vector<8x128xi32>
    %c16_i32 = arith.constant 16 : i32
    %22 = vector.broadcast %c16_i32 : i32 to vector<8x128xi32>
    %23 = arith.cmpi slt, %21, %22 : vector<8x128xi32>
    %24 = math.absf %3 : vector<8x128xf32>
    %cst_7 = arith.constant 0.000000e+00 : f32
    %25 = vector.broadcast %cst_7 : f32 to vector<8x128xf32>
    %26 = arith.subf %25, %24 : vector<8x128xf32>
    %27 = math.exp %26 : vector<8x128xf32>
    %cst_8 = arith.constant 1.000000e+00 : f32
    %28 = vector.broadcast %cst_8 : f32 to vector<8x128xf32>
    %29 = arith.addf %28, %27 : vector<8x128xf32>
    %30 = math.log %29 : vector<8x128xf32>
    %31 = arith.andi %15, %23 : vector<8x128xi1>
    %cst_9 = arith.constant 0.000000e+00 : f32
    %32 = vector.broadcast %cst_9 : f32 to vector<8x128xf32>
    %33 = arith.select %31, %30, %32 : vector<8x128xi1>, vector<8x128xf32>
    %c0_10 = arith.constant 0 : index
    %c0_11 = arith.constant 0 : index
    %34 = vector.load %arg5[%c0_10, %c0_11] : memref<8x128xf32, #tpu.memory_space<vmem>>, vector<8x128xf32>
    %35 = vector.shape_cast %33 : vector<8x128xf32> to vector<1x8x128xf32>
    %cst_12 = arith.constant dense<0.000000e+00> : vector<8x128xf32>
    %36 = vector.multi_reduction <add>, %35, %cst_12 [0] : vector<1x8x128xf32> to vector<8x128xf32>
    %37 = arith.addf %34, %36 : vector<8x128xf32>
    %c0_13 = arith.constant 0 : index
    %c0_14 = arith.constant 0 : index
    %38 = vector.load %arg5[%c0_13, %c0_14] : memref<8x128xf32, #tpu.memory_space<vmem>>, vector<8x128xf32>
    tpu.vector_store %arg5[%c0_13, %c0_14], %37 {strides = array<i32>} : memref<8x128xf32, #tpu.memory_space<vmem>>, vector<8x128xf32>,
    %c0_i32_15 = arith.constant 0 : i32
    %39 = arith.cmpi eq, %arg1, %c0_i32_15 : i32
    %40 = arith.extui %39 : i1 to i32
    %c0_i32_16 = arith.constant 0 : i32
    %41 = arith.cmpi ne, %40, %c0_i32_16 : i32
    scf.if %41 {
      %c0_17 = arith.constant 0 : index
      %c0_18 = arith.constant 0 : index
      %42 = vector.load %arg5[%c0_17, %c0_18] : memref<8x128xf32, #tpu.memory_space<vmem>>, vector<8x128xf32>
      %c0_19 = arith.constant 0 : index
      %c0_20 = arith.constant 0 : index
      %c0_21 = arith.constant 0 : index
      %43 = vector.load %arg4[%c0_19, %c0_20, %c0_21] : memref<1x8x128xf32, #tpu.memory_space<vmem>>, vector<1x8x128xf32>
      %44 = vector.shape_cast %43 : vector<1x8x128xf32> to vector<8x128xf32>
      %45 = vector.shape_cast %42 : vector<8x128xf32> to vector<1x8x128xf32>
      tpu.vector_store %arg4[%c0_19, %c0_20, %c0_21], %45 {strides = array<i32>} : memref<1x8x128xf32, #tpu.memory_space<vmem>>, vector<1x8x128xf32>,
    } else {
    }
    return
  }
  func.func @transform_0(%arg0: i32, %arg1: i32) -> (i32, i32) {
    %c1_i32 = arith.constant 1 : i32
    %0 = arith.muli %arg0, %c1_i32 : i32
    %1 = arith.addi %0, %arg1 : i32
    %c1_i32_0 = arith.constant 1 : i32
    %2 = arith.minsi %1, %c1_i32_0 : i32
    %c0_i32 = arith.constant 0 : i32
    %c0_i32_1 = arith.constant 0 : i32
    return %2, %c0_i32 : i32, i32
  }
  func.func @transform_1(%arg0: i32, %arg1: i32) -> (i32, i32) {
    %c1_i32 = arith.constant 1 : i32
    %0 = arith.muli %arg0, %c1_i32 : i32
    %1 = arith.addi %0, %arg1 : i32
    %c1_i32_0 = arith.constant 1 : i32
    %2 = arith.minsi %1, %c1_i32_0 : i32
    %c0_i32 = arith.constant 0 : i32
    %c0_i32_1 = arith.constant 0 : i32
    return %2, %c0_i32 : i32, i32
  }
  func.func @transform_2(%arg0: i32, %arg1: i32) -> (i32, i32, i32) {
    %c0_i32 = arith.constant 0 : i32
    %c0_i32_0 = arith.constant 0 : i32
    %c0_i32_1 = arith.constant 0 : i32
    return %arg0, %c0_i32, %c0_i32_0 : i32, i32, i32
  }
}

</mosaic_0001>

<llo_original>
// kernel: tpu_custom_call.1
$region0: #{tpu_custom_call.1}
  #allocation0 [shape = 'u32[]', space=smem, size = 0x4, offset = 0x4, fixed_abs, tag = 'smem constant byte address 0x4 - core index']
  #allocation1 [shape = 'u32[144,128]{1,0:T(1,128)}', space=vmem, size = 0x12000, scoped, tag = 'internal scratch']
  #allocation2 [shape = 'f32[8,128]{1,0:T(8,128)}', space=vmem, size = 0x1000, scoped, tag = 'scratch operand']
  %s0 = inlined_call_operand.hbm [shape: f32[16,128], index: 0, kind: input, shape index: {}]
  %s1 = inlined_call_operand.hbm [shape: f32[16,128], index: 1, kind: input, shape index: {}]
  %s2 = inlined_call_operand.hbm [shape: f32[2,8,128], index: 2, kind: output, shape index: {}]
  %s3 = sld [smem:[#allocation0]]
  $region57: #{tpu_custom_call.1} parent=0
    _
  %s5 = ssub.s32 1, %s3
  %s6 = scalar_select 0, %s5, %s3
  $region1: #{tpu_custom_call.1} parent=0
    #allocation3 [shape = 'u8[8192]{0}', space=vmem, size = 0x2000, scoped, tag = 'input window, operand 0']
    #allocation4 [shape = 's32[2]{0}', space=sflag, size = 0x8, scoped, tag = 'scoped memory for tpu_custom_call.1']
    #allocation5 [shape = 's32[2]{0}', space=sflag, size = 0x8, scoped, tag = 'scoped memory for tpu_custom_call.1']
    #allocation6 [shape = 'u8[8192]{0}', space=vmem, size = 0x2000, scoped, tag = 'input window, operand 1']
    #allocation7 [shape = 's32[2]{0}', space=sflag, size = 0x8, scoped, tag = 'scoped memory for tpu_custom_call.1']
    #allocation8 [shape = 'u8[8192]{0}', space=vmem, size = 0x2000, scoped, tag = 'output window, operand 0']
    %7 = vsyncpa [#allocation4], 0
    %s8 = scalar_lea.sflag [#allocation4], 1
    %9 = vsyncpa %s8, 0
    %10 = vsyncpa [#allocation7], 0
    %s11 = scalar_lea.sflag [#allocation7], 1
    %12 = vsyncpa %s11, 0
    %13 = vsyncpa [#allocation5], 0
    %s14 = scalar_lea.sflag [#allocation5], 1
    %15 = vsyncpa %s14, 0
    loop: start=0, step=1, limit=4
    $region2: #{tpu_custom_call.1} parent=1 // loop_pre_header
      _
    $region3: #{tpu_custom_call.1} parent=1 // loop_header
      %s17 = sphi 0, %s21
      %p18 = scmp.ge.s32.totalorder %s17, 4
      %s24 = sphi 0, %s36
      %s25 = sphi 0, %s32
      %s26 = sphi 0, %s24
      %s27 = sphi 0, %s25
      %s28 = sphi 0, %s26
      %s29 = sphi 0, %s27
      %s45 = sphi 0, %s47
      %s48 = sphi 0, %s45
      %s49 = sphi 0, %s48
      %s65 = sphi 0, %s49
      %s77 = sphi 0, %s79
      %s80 = sphi 0, %s77
      %s81 = sphi 0, %s80
      %s97 = sphi 0, %s81
      %s103 = sphi 0, %s105
      %s106 = sphi 0, %s103
      %s107 = sphi 0, %s106
      %s123 = sphi 0, %s107
    $region4: #{tpu_custom_call.1} parent=1 // loop_header_branch
      %20 = sbr.rel (%p18) target = $region8
    $region5: #{tpu_custom_call.1} parent=1 // loop_body
      %s22 = ssub.s32 %s17, 1
      %s23 = ssub.s32 %s17, 2
      %s30 = sadd.s32 1, %s25
      %p31 = scmp.ge.s32.totalorder %s30, 1
      %s32 = scalar_select %p31, 0, %s30
      %s33 = sadd.s32 1, %s24
      %s34 = scalar_select %p31, %s33, %s24
      %p35 = scmp.ge.s32.totalorder %s34, 2
      %s36 = scalar_select %p35, 0, %s34
      %s37 = sadd.s32 %s24, %s25
      %p38 = scmp.lt.s32.totalorder %s37, 1
      %s39 = scalar_select %p38, %s37, 1
      %s40 = sadd.s32 %s36, %s32
      %p41 = scmp.lt.s32.totalorder %s40, 1
      %s42 = scalar_select %p41, %s40, 1
      %s43 = ssub.s32 %s39, %s42
      %p44 = scmp.eq.s32.totalorder %s43, 0
      %s46 = sadd.s32 %s45, 1
      %s47 = scalar_select %p44, %s45, %s46
      %p50 = pneg %p44
      %p51 = scmp.eq.s32.totalorder %s17, 1
      %p52 = por %p50, %p51
      %p53 = scmp.ne.s32.totalorder %s45, %s48
      %p54 = scmp.eq.s32.totalorder %s17, 0
      %p55 = por %p53, %p54
      %p56 = scmp.ne.s32.totalorder %s45, %s48
      %p57 = scmp.eq.s32.totalorder %s22, 1
      %p58 = por %p56, %p57
      %p59 = scmp.ne.s32.totalorder %s48, %s49
      %p60 = scmp.eq.s32.totalorder %s22, 0
      %p61 = por %p59, %p60
      %p62 = scmp.ne.s32.totalorder %s48, %s49
      %p63 = scmp.eq.s32.totalorder %s23, 1
      %p64 = por %p62, %p63
      %p66 = scmp.ne.s32.totalorder %s49, %s65
      %p67 = scmp.eq.s32.totalorder %s23, 0
      %p68 = por %p66, %p67
      %s69 = sadd.s32 %s24, %s25
      %p70 = scmp.lt.s32.totalorder %s69, 1
      %s71 = scalar_select %p70, %s69, 1
      %s72 = sadd.s32 %s36, %s32
      %p73 = scmp.lt.s32.totalorder %s72, 1
      %s74 = scalar_select %p73, %s72, 1
      %s75 = ssub.s32 %s71, %s74
      %p76 = scmp.eq.s32.totalorder %s75, 0
      %s78 = sadd.s32 %s77, 1
      %s79 = scalar_select %p76, %s77, %s78
      %p82 = pneg %p76
      %p83 = scmp.eq.s32.totalorder %s17, 1
      %p84 = por %p82, %p83
      %p85 = scmp.ne.s32.totalorder %s77, %s80
      %p86 = scmp.eq.s32.totalorder %s17, 0
      %p87 = por %p85, %p86
      %p88 = scmp.ne.s32.totalorder %s77, %s80
      %p89 = scmp.eq.s32.totalorder %s22, 1
      %p90 = por %p88, %p89
      %p91 = scmp.ne.s32.totalorder %s80, %s81
      %p92 = scmp.eq.s32.totalorder %s22, 0
      %p93 = por %p91, %p92
      %p94 = scmp.ne.s32.totalorder %s80, %s81
      %p95 = scmp.eq.s32.totalorder %s23, 1
      %p96 = por %p94, %p95
      %p98 = scmp.ne.s32.totalorder %s81, %s97
      %p99 = scmp.eq.s32.totalorder %s23, 0
      %p100 = por %p98, %p99
      %s101 = ssub.s32 %s24, %s36
      %p102 = scmp.eq.s32.totalorder %s101, 0
      %s104 = sadd.s32 %s103, 1
      %s105 = scalar_select %p102, %s103, %s104
      %p108 = pneg %p102
      %p109 = scmp.eq.s32.totalorder %s17, 1
      %p110 = por %p108, %p109
      %p111 = scmp.ne.s32.totalorder %s103, %s106
      %p112 = scmp.eq.s32.totalorder %s17, 0
      %p113 = por %p111, %p112
      %p114 = scmp.ne.s32.totalorder %s103, %s106
      %p115 = scmp.eq.s32.totalorder %s22, 1
      %p116 = por %p114, %p115
      %p117 = scmp.ne.s32.totalorder %s106, %s107
      %p118 = scmp.eq.s32.totalorder %s22, 0
      %p119 = por %p117, %p118
      %p120 = scmp.ne.s32.totalorder %s106, %s107
      %p121 = scmp.eq.s32.totalorder %s23, 1
      %p122 = por %p120, %p121
      %p124 = scmp.ne.s32.totalorder %s107, %s123
      %p125 = scmp.eq.s32.totalorder %s23, 0
      %p126 = por %p124, %p125
      %p127 = scmp.le.s32.totalorder 1, %s17
      %p128 = scmp.lt.s32.totalorder %s17, 3
      %p129 = pnand %p127, %p128
      %p130 = pneg %p129
      // Predicated region
      $region9: #{tpu_custom_call.1} parent=5 // pred_check
        _
      $region10: #{tpu_custom_call.1} parent=5 // pred_check_branch
        %132 = sbr.rel (%p129) target = $region12
      $region11: #{tpu_custom_call.1} parent=5 // pred_region
        %s133 = ssub.s32 %s17, 1
      $region12: #{tpu_custom_call.1} parent=5 // pred_fallthru
        _
      %p134 = scmp.lt.s32.totalorder %s17, 2
      // Predicated region
      $region13: #{tpu_custom_call.1} parent=5 // pred_check
        %p135 = pneg %p134
      $region14: #{tpu_custom_call.1} parent=5 // pred_check_branch
        %137 = sbr.rel (%p135) target = $region16
      $region15: #{tpu_custom_call.1} parent=5 // pred_region
        // Predicated region
        $region17: #{tpu_custom_call.1} parent=15 // pred_check
          %p138 = pneg %p55
        $region18: #{tpu_custom_call.1} parent=15 // pred_check_branch
          %140 = sbr.rel (%p138) target = $region20
        $region19: #{tpu_custom_call.1} parent=15 // pred_region
          %s141 = sand.u32 %s45, 1
          %s142 = scalar_lea.sflag [#allocation4], %s141
          %s143 = sand.u32 %s45, 1
          %s144 = smul.addr %s143, 8
          %s145 = scalar_lea.vmem [#allocation3], %s144
          %s146 = sadd.s32 %s24, %s25
          %p147 = scmp.lt.s32.totalorder %s146, 1
          %s148 = scalar_select %p147, %s146, 1
          %s150 = ssub.s32 128, 128
          %151 = vsyncadd %s142, %s150
          %s152 = smul.addr %s148, 128
          %s153 = scalar_lea.hbm %s0, %s152
          %s155 = sshll.u32 %s145, 4
          %s156 = int_to_ptr.vmem [resolvable:$true] %s155
          %158 = dma.hbm_to_vmem [thread:$0]  %s153, 128, %s156, %s142
        $region20: #{tpu_custom_call.1} parent=15 // pred_fallthru
          _
        // Predicated region
        $region21: #{tpu_custom_call.1} parent=15 // pred_check
          %p159 = pneg %p87
        $region22: #{tpu_custom_call.1} parent=15 // pred_check_branch
          %161 = sbr.rel (%p159) target = $region24
        $region23: #{tpu_custom_call.1} parent=15 // pred_region
          %s162 = sand.u32 %s77, 1
          %s163 = scalar_lea.sflag [#allocation7], %s162
          %s164 = sand.u32 %s77, 1
          %s165 = smul.addr %s164, 8
          %s166 = scalar_lea.vmem [#allocation6], %s165
          %s167 = sadd.s32 %s24, %s25
          %p168 = scmp.lt.s32.totalorder %s167, 1
          %s169 = scalar_select %p168, %s167, 1
          %s171 = ssub.s32 128, 128
          %172 = vsyncadd %s163, %s171
          %s173 = smul.addr %s169, 128
          %s174 = scalar_lea.hbm %s1, %s173
          %s176 = sshll.u32 %s166, 4
          %s177 = int_to_ptr.vmem [resolvable:$true] %s176
          %179 = dma.hbm_to_vmem [thread:$0]  %s174, 128, %s177, %s163
        $region24: #{tpu_custom_call.1} parent=15 // pred_fallthru
          _
      $region16: #{tpu_custom_call.1} parent=5 // pred_fallthru
        _
      %p180 = scmp.le.s32.totalorder 1, %s17
      %p181 = scmp.lt.s32.totalorder %s17, 3
      %p182 = pnand %p180, %p181
      %p183 = pneg %p182
      // Predicated region
      $region25: #{tpu_custom_call.1} parent=5 // pred_check
        _
      $region26: #{tpu_custom_call.1} parent=5 // pred_check_branch
        %185 = sbr.rel (%p182) target = $region28
      $region27: #{tpu_custom_call.1} parent=5 // pred_region
        %s186 = ssub.s32 %s17, 1
        %s187 = sand.u32 %s48, 1
        %s188 = scalar_lea.sflag [#allocation4], %s187
        %s189 = sand.u32 %s48, 1
        %s190 = smul.addr %s189, 8
        %s191 = scalar_lea.vmem [#allocation3], %s190
        // Predicated region
        $region29: #{tpu_custom_call.1} parent=27 // pred_check
          %p192 = pneg %p61
        $region30: #{tpu_custom_call.1} parent=27 // pred_check_branch
          %194 = sbr.rel (%p192) target = $region32
        $region31: #{tpu_custom_call.1} parent=27 // pred_region
          %195 = dma.done %s188, 128
        $region32: #{tpu_custom_call.1} parent=27 // pred_fallthru
          _
        %s196 = sand.u32 %s80, 1
        %s197 = scalar_lea.sflag [#allocation7], %s196
        %s198 = sand.u32 %s80, 1
        %s199 = smul.addr %s198, 8
        %s200 = scalar_lea.vmem [#allocation6], %s199
        // Predicated region
        $region33: #{tpu_custom_call.1} parent=27 // pred_check
          %p201 = pneg %p93
        $region34: #{tpu_custom_call.1} parent=27 // pred_check_branch
          %203 = sbr.rel (%p201) target = $region36
        $region35: #{tpu_custom_call.1} parent=27 // pred_region
          %204 = dma.done %s197, 128
        $region36: #{tpu_custom_call.1} parent=27 // pred_fallthru
          _
        %s205 = sand.u32 %s48, 1
        %s206 = scalar_lea.sflag [#allocation4], %s205
        %s207 = sand.u32 %s48, 1
        %s208 = smul.addr %s207, 8
        %s209 = scalar_lea.vmem [#allocation3], %s208
        %p210 = pneg %p61
        %p211 = pneg %p58
        %s212 = sand.u32 %s80, 1
        %s213 = scalar_lea.sflag [#allocation7], %s212
        %s214 = sand.u32 %s80, 1
        %s215 = smul.addr %s214, 8
        %s216 = scalar_lea.vmem [#allocation6], %s215
        %p217 = pneg %p93
        %p218 = pneg %p90
        %p219 = pneg %p119
        %p220 = pneg %p116
        %s221 = sand.u32 %s106, 1
        %s222 = scalar_lea.sflag [#allocation5], %s221
        %s223 = sand.u32 %s106, 1
        %s224 = smul.addr %s223, 8
        %s225 = scalar_lea.vmem [#allocation8], %s224
        %s226 = sadd.s32 %s26, %s27
        %p227 = scmp.lt.s32.totalorder %s226, 1
        %s228 = scalar_select %p227, %s226, 1
        %s229 = sadd.s32 %s26, %s27
        %p230 = scmp.lt.s32.totalorder %s229, 1
        %s231 = scalar_select %p230, %s229, 1
        %p232 = scmp.eq.s32.totalorder %s27, 0
        // Predicated region
        $region37: #{tpu_custom_call.1} parent=27 // pred_check
          %p233 = pneg %p232
        $region38: #{tpu_custom_call.1} parent=27 // pred_check_branch
          %235 = sbr.rel (%p233) target = $region40
        $region39: #{tpu_custom_call.1} parent=27 // pred_region
          %236 = vst [vmem:[#allocation2] sm:$0xff] 0.0
        $region40: #{tpu_custom_call.1} parent=27 // pred_fallthru
          _
        %v237 = vld [vmem:[%s191] sm:$0xff]
        %v238 = vld [vmem:[%s200] sm:$0xff]
        %vm239 = vcmp.gt.f32.partialorder %v237, 1.734601
        %vm240 = vcmp.gt.f32.partialorder %v238, 1.734601
        %vm241 = vmand %vm239, %vm240
        %vm242 = vcmp.lt.f32.partialorder %v237, -1.734601
        %vm243 = vcmp.lt.f32.partialorder %v238, -1.734601
        %vm244 = vmand %vm242, %vm243
        %vm245 = vmor %vm241, %vm244
        %s246 = sadd.s32 %s26, %s27
        %s247 = smul.u32 %s246, 8
        %v248 = vlaneseq
        %v249 = vshrl.u32 %v248, 7
        %v250 = vstv %s247
        %v251 = vadd.s32 %v250, %v249
        %vm252 = vcmp.lt.s32.totalorder %v251, 16
        %v253 = vand.u32 2147483647, %v237
        %v254 = vsub.f32 0.0, %v253
        %v255 = vmul.f32 %v254, 1.442695
        %v256 = vpow.pop %v255
        %v257 = vadd.f32 %v256, 1.0
        %v258 = vlog2.pop %v257
        %v259 = vmul.f32 %v258, 0.6931472
        %vm260 = vmand %vm245, %vm252
        %v261 = vsel %vm260, %v259, 0.0
        %v262 = vld [vmem:[#allocation2] sm:$0xff]
        %v263 = vadd.f32 %v261, 0.0
        %v264 = vadd.f32 %v262, %v263
        %265 = vst [vmem:[#allocation2] sm:$0xff] %v264
        // Predicated region
        $region41: #{tpu_custom_call.1} parent=27 // pred_check
          %p266 = pneg %p232
        $region42: #{tpu_custom_call.1} parent=27 // pred_check_branch
          %268 = sbr.rel (%p266) target = $region44
        $region43: #{tpu_custom_call.1} parent=27 // pred_region
          %v269 = vld [vmem:[#allocation2] sm:$0xff]
          %270 = vst [vmem:[%s225] sm:$0xff] %v269
        $region44: #{tpu_custom_call.1} parent=27 // pred_fallthru
          _
        %s271 = sand.u32 %s106, 1
        %s272 = scalar_lea.sflag [#allocation5], %s271
        %s273 = sand.u32 %s106, 1
        %s274 = smul.addr %s273, 8
        %s275 = scalar_lea.vmem [#allocation8], %s274
        // Predicated region
        $region45: #{tpu_custom_call.1} parent=27 // pred_check
          %p276 = pneg %p116
        $region46: #{tpu_custom_call.1} parent=27 // pred_check_branch
          %278 = sbr.rel (%p276) target = $region48
        $region47: #{tpu_custom_call.1} parent=27 // pred_region
          %s280 = ssub.s32 128, 128
          %281 = vsyncadd %s272, %s280
          %s282 = smul.addr %s26, 128
          %s283 = scalar_lea.hbm %s2, %s282
          %s285 = sshll.u32 %s275, 4
          %s286 = int_to_ptr.vmem [resolvable:$true] %s285
          %288 = dma.vmem_to_hbm [thread:$0]  %s286, 128, %s283, %s272
        $region48: #{tpu_custom_call.1} parent=27 // pred_fallthru
          _
      $region28: #{tpu_custom_call.1} parent=5 // pred_fallthru
        _
      %p289 = scmp.le.s32.totalorder 2, %s17
      // Predicated region
      $region49: #{tpu_custom_call.1} parent=5 // pred_check
        %p290 = pneg %p289
      $region50: #{tpu_custom_call.1} parent=5 // pred_check_branch
        %292 = sbr.rel (%p290) target = $region52
      $region51: #{tpu_custom_call.1} parent=5 // pred_region
        %s293 = ssub.s32 %s17, 2
        // Predicated region
        $region53: #{tpu_custom_call.1} parent=51 // pred_check
          %p294 = pneg %p122
        $region54: #{tpu_custom_call.1} parent=51 // pred_check_branch
          %296 = sbr.rel (%p294) target = $region56
        $region55: #{tpu_custom_call.1} parent=51 // pred_region
          %s297 = sand.u32 %s107, 1
          %s298 = scalar_lea.sflag [#allocation5], %s297
          %s299 = sand.u32 %s107, 1
          %s300 = smul.addr %s299, 8
          %s301 = scalar_lea.vmem [#allocation8], %s300
          %302 = dma.done %s298, 128
        $region56: #{tpu_custom_call.1} parent=51 // pred_fallthru
          _
      $region52: #{tpu_custom_call.1} parent=5 // pred_fallthru
        _
    $region6: #{tpu_custom_call.1} parent=1 // loop_footer
      %s21 = sadd.s32 1, %s17
    $region7: #{tpu_custom_call.1} parent=1 // loop_footer_branch
      %16 = sbr.rel target = $region3
    $region8: #{tpu_custom_call.1} parent=1 // loop_exit
      _
    %303 = vsyncpa [#allocation4], 1
    %s304 = scalar_lea.sflag [#allocation4], 1
    %305 = vsyncpa %s304, 1
    %306 = vsyncpa [#allocation7], 1
    %s307 = scalar_lea.sflag [#allocation7], 1
    %308 = vsyncpa %s307, 1
    %309 = vsyncpa [#allocation5], 1
    %s310 = scalar_lea.sflag [#allocation5], 1
    %311 = vsyncpa %s310, 1

</llo_original>
